<compile_context>
chip_gen: v7x
topology: tpu7x:2x2x1
jax: 0.10.0
libtpu: 0.0.40
codegen_flags: <defaults>
</compile_context>

<pallas_src>
import math
import functools

import jax
import jax.numpy as jnp
from jax import lax
from jax.experimental import pallas as pl
from jax.experimental.pallas import tpu as pltpu


def _mha_kernel(x_ref, wqkv_ref, bqkv_ref, wproj_ref, bproj_ref, o_ref,
                qkv_scr, y_scr, *, n_heads, head_dim, seq_len, bt, t_pad):
    # x_ref block: (Bt*T_pad, C) bf16 (already cast in the wrapper).
    C = wproj_ref.shape[0]
    D = head_dim

    # qkv projection: (rows, C) @ (C, 3C), f32 accumulation, bias add, then a
    # single cast to the bf16 VMEM scratch.  The 1/sqrt(D) scale is already
    # folded into the q columns of W_qkv / b_qkv by the wrapper.
    qkv = jnp.dot(x_ref[...], wqkv_ref[...], preferred_element_type=jnp.float32)
    qkv_scr[...] = (qkv + bqkv_ref[...]).astype(jnp.bfloat16)

    # Additive key-padding bias row: 0 for valid keys, -1e30 for padded keys.
    # Only materialized when the wrapper actually padded T (static condition).
    need_mask = t_pad > seq_len
    if need_mask:
        key_ids = lax.broadcasted_iota(jnp.int32, (1, t_pad), 1)
        key_bias = jnp.where(key_ids < seq_len, 0.0, -1e30).astype(jnp.float32)

    # Static (unrolled) loops over batch elements in this block and heads.
    # q/k/v are lane-column / sublane-row slices of the bf16 scratch, so no
    # reshape/transpose relayouts are needed and nothing big stays live.
    for b in range(bt):
        r0 = b * t_pad
        for h in range(n_heads):
            q = qkv_scr[r0:r0 + t_pad, 0 * C + h * D: 0 * C + (h + 1) * D]
            k = qkv_scr[r0:r0 + t_pad, 1 * C + h * D: 1 * C + (h + 1) * D]
            v = qkv_scr[r0:r0 + t_pad, 2 * C + h * D: 2 * C + (h + 1) * D]

            # att[t, s] = q[t, :] . k[s, :]  -> (T_pad, T_pad), f32 accumulation.
            att = lax.dot_general(q, k, (((1,), (1,)), ((), ())),
                                  preferred_element_type=jnp.float32)
            if need_mask:
                att = att + key_bias

            # Numerically stable softmax; EUP reciprocal instead of a divide.
            att = att - jnp.max(att, axis=-1, keepdims=True)
            att = jnp.exp(att)
            denom = jnp.sum(att, axis=-1, keepdims=True)
            att = att * pl.reciprocal(denom, approx=True)

            # attn_dropout: identity (see TODO at top).

            # y_h = att @ v -> (T_pad, D); stored straight into the bf16
            # output scratch at its head column offset.
            y_h = jnp.dot(att.astype(jnp.bfloat16), v,
                          preferred_element_type=jnp.float32)
            y_scr[r0:r0 + t_pad, h * D:(h + 1) * D] = y_h.astype(jnp.bfloat16)

    # Output projection over the full (rows, C) slab (MXU-efficient).
    out = jnp.dot(y_scr[...], wproj_ref[...], preferred_element_type=jnp.float32)
    o_ref[...] = (out + bproj_ref[...]).astype(o_ref.dtype)


def multi_head_attention(x, w_qkv, b_qkv, w_proj, b_proj, *, n_heads):
    """x: (B, T, C); w_qkv: (C, 3C); b_qkv: (3C,); w_proj: (C, C); b_proj: (C,)."""
    B, T, C = x.shape
    assert C % n_heads == 0
    head_dim = C // n_heads
    scale = 1.0 / math.sqrt(head_dim)
    out_dtype = x.dtype

    # Fold the attention scale into the q columns of the qkv projection
    # (zero in-kernel cost).
    q_col_scale = jnp.concatenate([
        jnp.full((C,), scale, jnp.float32),
        jnp.ones((2 * C,), jnp.float32),
    ])
    w_qkv_bf = (w_qkv.astype(jnp.float32) * q_col_scale[None, :]).astype(jnp.bfloat16)
    b_qkv_2d = (b_qkv.astype(jnp.float32) * q_col_scale).reshape(1, 3 * C)
    w_proj_bf = w_proj.astype(jnp.bfloat16)
    b_proj_2d = b_proj.astype(jnp.float32).reshape(1, C)

    # Pad T to a multiple of 16 (bf16 sublane packing).
    T_pad = ((T + 15) // 16) * 16

    # Batch block: aim for ~256 rows per grid step (fills the MXU M-dim),
    # keep the grid length >= 2 when possible (v7x has 2 TensorCores).
    Bt = max(1, min(B, 256 // T_pad))
    if B >= 2:
        Bt = min(Bt, max(1, B // 2))

    # Keep the per-step working set comfortably inside a 32 MiB scoped-VMEM
    # budget (safe on v5e / v6e / v7x): x + out blocks (double-buffered),
    # bf16 qkv / y scratch, and the (double-buffered) bf16 weights.
    out_isize = jnp.dtype(out_dtype).itemsize

    def _vmem_need(bt):
        rows = bt * T_pad
        xo = rows * C * (2 * 2 + 2 * out_isize)          # x (bf16) + out blocks, x2 buffers
        scr = rows * (3 * C + C) * 2                     # bf16 qkv + y scratch
        wts = 2 * (3 * C * C + C * C) * 2 + 2 * (3 * C + C) * 4
        att = T_pad * T_pad * 4                          # transient per-head logits
        return xo + scr + wts + att

    while Bt > 1 and _vmem_need(Bt) > 24 * 1024 * 1024:
        Bt = max(1, Bt // 2)

    B_pad = ((B + Bt - 1) // Bt) * Bt

    # bf16 input; pad batch / sequence (padded keys are masked in-kernel,
    # padded rows are sliced off below).
    xp = x.astype(jnp.bfloat16)
    if T_pad != T or B_pad != B:
        xp = jnp.pad(xp, ((0, B_pad - B), (0, T_pad - T), (0, 0)))
    x_flat = xp.reshape(B_pad * T_pad, C)

    rows_blk = Bt * T_pad
    grid = (B_pad // Bt,)

    kernel = functools.partial(_mha_kernel, n_heads=n_heads, head_dim=head_dim,
                               seq_len=T, bt=Bt, t_pad=T_pad)

    out = pl.pallas_call(
        kernel,
        out_shape=jax.ShapeDtypeStruct((B_pad * T_pad, C), out_dtype),
        grid_spec=pltpu.PrefetchScalarGridSpec(
            num_scalar_prefetch=0,
            grid=grid,
            in_specs=[
                pl.BlockSpec((rows_blk, C), lambda i: (i, 0)),     # x (bf16)
                pl.BlockSpec((C, 3 * C), lambda i: (0, 0)),        # w_qkv (bf16)
                pl.BlockSpec((1, 3 * C), lambda i: (0, 0)),        # b_qkv (f32)
                pl.BlockSpec((C, C), lambda i: (0, 0)),            # w_proj (bf16)
                pl.BlockSpec((1, C), lambda i: (0, 0)),            # b_proj (f32)
            ],
            out_specs=pl.BlockSpec((rows_blk, C), lambda i: (i, 0)),
            scratch_shapes=[
                pltpu.VMEM((rows_blk, 3 * C), jnp.bfloat16),       # qkv scratch
                pltpu.VMEM((rows_blk, C), jnp.bfloat16),           # y (head outs)
            ],
        ),
        compiler_params=pltpu.CompilerParams(
            dimension_semantics=("parallel",),
            vmem_limit_bytes=32 * 1024 * 1024),
    )(x_flat, w_qkv_bf, b_qkv_2d, w_proj_bf, b_proj_2d)

    out = out.reshape(B_pad, T_pad, C)
    if T_pad != T or B_pad != B:
        out = out[:B, :T, :]
    return out


def _reference(x, w_qkv, b_qkv, w_proj, b_proj, n_heads):
    B, T, C = x.shape
    head_dim = C // n_heads
    qkv = x @ w_qkv + b_qkv
    q, k, v = jnp.split(qkv, 3, axis=-1)
    q = q.reshape(B, T, n_heads, head_dim).transpose(0, 2, 1, 3)
    k = k.reshape(B, T, n_heads, head_dim).transpose(0, 2, 1, 3)
    v = v.reshape(B, T, n_heads, head_dim).transpose(0, 2, 1, 3)
    att = jnp.einsum('bhtd,bhsd->bhts', q, k) / math.sqrt(head_dim)
    att = jax.nn.softmax(att, axis=-1)
    y = jnp.einsum('bhts,bhsd->bhtd', att, v)
    y = y.transpose(0, 2, 1, 3).reshape(B, T, C)
    return y @ w_proj + b_proj


if __name__ == "__main__":
    C = 32
    n_heads = 4

    key = jax.random.PRNGKey(0)
    kx, k1, k2, k3, k4, kx2 = jax.random.split(key, 6)

    # Deterministic init mimicking nn.Linear's uniform(-1/sqrt(in), 1/sqrt(in)).
    bound = 1.0 / math.sqrt(C)
    w_qkv = jax.random.uniform(k1, (C, 3 * C), jnp.float32, -bound, bound)
    b_qkv = jax.random.uniform(k2, (3 * C,), jnp.float32, -bound, bound)
    w_proj = jax.random.uniform(k3, (C, C), jnp.float32, -bound, bound)
    b_proj = jax.random.uniform(k4, (C,), jnp.float32, -bound, bound)

    # Test 1: T aligned to 16 (no padding / no mask path).
    B, T = 2, 16
    x = jax.random.normal(kx, (B, T, C), dtype=jnp.float32)
    out = multi_head_attention(x, w_qkv, b_qkv, w_proj, b_proj, n_heads=n_heads)
    out = jax.block_until_ready(out)
    ref = _reference(x, w_qkv, b_qkv, w_proj, b_proj, n_heads)
    assert out.shape == (B, T, C)
    # bf16 MXU operands -> loosened tolerance vs. the f32 reference.
    assert jnp.allclose(out, ref, atol=5e-2, rtol=5e-2), "mismatch vs reference (T=16)"

    # Test 2: unaligned T and B not divisible by the batch block
    # (exercises sequence padding + key mask + batch padding paths).
    B2, T2 = 5, 12
    x2 = jax.random.normal(kx2, (B2, T2, C), dtype=jnp.float32)
    out2 = multi_head_attention(x2, w_qkv, b_qkv, w_proj, b_proj, n_heads=n_heads)
    out2 = jax.block_until_ready(out2)
    ref2 = _reference(x2, w_qkv, b_qkv, w_proj, b_proj, n_heads)
    assert out2.shape == (B2, T2, C)
    assert jnp.allclose(out2, ref2, atol=5e-2, rtol=5e-2), "mismatch vs reference (T=12)"

    print("KERNEL_OK")
</pallas_src>

<mosaic_0001>
module attributes {stable_mosaic.version = 11 : i64} {
  func.func @_mha_kernel(%arg0: i32, %arg1: memref<16x32xbf16, #tpu.memory_space<vmem>>, %arg2: memref<32x96xbf16, #tpu.memory_space<vmem>>, %arg3: memref<1x96xf32, #tpu.memory_space<vmem>>, %arg4: memref<32x32xbf16, #tpu.memory_space<vmem>>, %arg5: memref<1x32xf32, #tpu.memory_space<vmem>>, %arg6: memref<16x32xf32, #tpu.memory_space<vmem>>, %arg7: memref<16x96xbf16, #tpu.memory_space<vmem>>, %arg8: memref<16x32xbf16, #tpu.memory_space<vmem>>) attributes {dimension_semantics = [#tpu.dimension_semantics<parallel>], iteration_bounds = array<i64: 2>, scalar_prefetch = 0 : i64, scratch_operands = 2 : i64, tpu.core_type = #tpu.core_type<tc>, window_params = [{transform_indices = @transform_0, window_bounds = array<i64: 16, 32>}, {pipeline_mode = #tpu.pipeline_mode<synchronous>, transform_indices = @transform_1, window_bounds = array<i64: 32, 96>}, {pipeline_mode = #tpu.pipeline_mode<synchronous>, transform_indices = @transform_2, window_bounds = array<i64: 1, 96>}, {pipeline_mode = #tpu.pipeline_mode<synchronous>, transform_indices = @transform_3, window_bounds = array<i64: 32, 32>}, {pipeline_mode = #tpu.pipeline_mode<synchronous>, transform_indices = @transform_4, window_bounds = array<i64: 1, 32>}, {transform_indices = @transform_5, window_bounds = array<i64: 16, 32>}]} {
    %c0 = arith.constant 0 : index
    %c0_0 = arith.constant 0 : index
    %0 = vector.load %arg1[%c0, %c0_0] : memref<16x32xbf16, #tpu.memory_space<vmem>>, vector<16x32xbf16>
    %c0_1 = arith.constant 0 : index
    %c0_2 = arith.constant 0 : index
    %1 = vector.load %arg2[%c0_1, %c0_2] : memref<32x96xbf16, #tpu.memory_space<vmem>>, vector<32x96xbf16>
    %cst = arith.constant dense<0.000000e+00> : vector<16x96xf32>
    %2 = tpu.matmul %0, %1, %cst {dimension_numbers = #tpu.dot_dimension_numbers<[1], [0], [0], [1], [0, 0, 1, 1], [], []>} : vector<16x32xbf16>, vector<32x96xbf16>, vector<16x96xf32> -> vector<16x96xf32>
    %c0_3 = arith.constant 0 : index
    %c0_4 = arith.constant 0 : index
    %3 = vector.load %arg3[%c0_3, %c0_4] : memref<1x96xf32, #tpu.memory_space<vmem>>, vector<1x96xf32>
    %4 = vector.broadcast %3 : vector<1x96xf32> to vector<16x96xf32>
    %5 = arith.addf %2, %4 : vector<16x96xf32>
    %6 = arith.truncf %5 : vector<16x96xf32> to vector<16x96xbf16>
    %c0_5 = arith.constant 0 : index
    %c0_6 = arith.constant 0 : index
    %7 = vector.load %arg7[%c0_5, %c0_6] : memref<16x96xbf16, #tpu.memory_space<vmem>>, vector<16x96xbf16>
    tpu.vector_store %arg7[%c0_5, %c0_6], %6 {strides = array<i32>} : memref<16x96xbf16, #tpu.memory_space<vmem>>, vector<16x96xbf16>,
    %c0_7 = arith.constant 0 : index
    %c0_8 = arith.constant 0 : index
    %8 = vector.load %arg7[%c0_7, %c0_8] : memref<16x96xbf16, #tpu.memory_space<vmem>>, vector<16x8xbf16>
    %c0_9 = arith.constant 0 : index
    %c32 = arith.constant 32 : index
    %9 = vector.load %arg7[%c0_9, %c32] : memref<16x96xbf16, #tpu.memory_space<vmem>>, vector<16x8xbf16>
    %c0_10 = arith.constant 0 : index
    %c64 = arith.constant 64 : index
    %10 = vector.load %arg7[%c0_10, %c64] : memref<16x96xbf16, #tpu.memory_space<vmem>>, vector<16x8xbf16>
    %cst_11 = arith.constant dense<0.000000e+00> : vector<16x16xf32>
    %11 = tpu.matmul %8, %9, %cst_11 {dimension_numbers = #tpu.dot_dimension_numbers<[1], [1], [0], [0], [0, 0, 1, 0], [], []>} : vector<16x8xbf16>, vector<16x8xbf16>, vector<16x16xf32> -> vector<16x16xf32>
    %cst_12 = arith.constant dense<0xFF800000> : vector<16xf32>
    %12 = vector.multi_reduction <maximumf>, %11, %cst_12 [1] : vector<16x16xf32> to vector<16xf32>
    %13 = vector.shape_cast %12 : vector<16xf32> to vector<16x1xf32>
    %14 = vector.broadcast %13 : vector<16x1xf32> to vector<16x16xf32>
    %15 = arith.subf %11, %14 : vector<16x16xf32>
    %16 = math.exp %15 : vector<16x16xf32>
    %cst_13 = arith.constant dense<0.000000e+00> : vector<16xf32>
    %17 = vector.multi_reduction <add>, %16, %cst_13 [1] : vector<16x16xf32> to vector<16xf32>
    %18 = vector.shape_cast %17 : vector<16xf32> to vector<16x1xf32>
    %19 = tpu.reciprocal %18 {approx = true} : vector<16x1xf32> -> vector<16x1xf32>
    %20 = vector.broadcast %19 : vector<16x1xf32> to vector<16x16xf32>
    %21 = arith.mulf %16, %20 : vector<16x16xf32>
    %22 = arith.truncf %21 : vector<16x16xf32> to vector<16x16xbf16>
    %cst_14 = arith.constant dense<0.000000e+00> : vector<16x8xf32>
    %23 = tpu.matmul %22, %10, %cst_14 {dimension_numbers = #tpu.dot_dimension_numbers<[1], [0], [0], [1], [0, 0, 1, 1], [], []>} : vector<16x16xbf16>, vector<16x8xbf16>, vector<16x8xf32> -> vector<16x8xf32>
    %24 = arith.truncf %23 : vector<16x8xf32> to vector<16x8xbf16>
    %c0_15 = arith.constant 0 : index
    %c0_16 = arith.constant 0 : index
    %25 = vector.load %arg8[%c0_15, %c0_16] : memref<16x32xbf16, #tpu.memory_space<vmem>>, vector<16x8xbf16>
    tpu.vector_store %arg8[%c0_15, %c0_16], %24 {strides = array<i32>} : memref<16x32xbf16, #tpu.memory_space<vmem>>, vector<16x8xbf16>,
    %c0_17 = arith.constant 0 : index
    %c8 = arith.constant 8 : index
    %26 = vector.load %arg7[%c0_17, %c8] : memref<16x96xbf16, #tpu.memory_space<vmem>>, vector<16x8xbf16>
    %c0_18 = arith.constant 0 : index
    %c40 = arith.constant 40 : index
    %27 = vector.load %arg7[%c0_18, %c40] : memref<16x96xbf16, #tpu.memory_space<vmem>>, vector<16x8xbf16>
    %c0_19 = arith.constant 0 : index
    %c72 = arith.constant 72 : index
    %28 = vector.load %arg7[%c0_19, %c72] : memref<16x96xbf16, #tpu.memory_space<vmem>>, vector<16x8xbf16>
    %cst_20 = arith.constant dense<0.000000e+00> : vector<16x16xf32>
    %29 = tpu.matmul %26, %27, %cst_20 {dimension_numbers = #tpu.dot_dimension_numbers<[1], [1], [0], [0], [0, 0, 1, 0], [], []>} : vector<16x8xbf16>, vector<16x8xbf16>, vector<16x16xf32> -> vector<16x16xf32>
    %cst_21 = arith.constant dense<0xFF800000> : vector<16xf32>
    %30 = vector.multi_reduction <maximumf>, %29, %cst_21 [1] : vector<16x16xf32> to vector<16xf32>
    %31 = vector.shape_cast %30 : vector<16xf32> to vector<16x1xf32>
    %32 = vector.broadcast %31 : vector<16x1xf32> to vector<16x16xf32>
    %33 = arith.subf %29, %32 : vector<16x16xf32>
    %34 = math.exp %33 : vector<16x16xf32>
    %cst_22 = arith.constant dense<0.000000e+00> : vector<16xf32>
    %35 = vector.multi_reduction <add>, %34, %cst_22 [1] : vector<16x16xf32> to vector<16xf32>
    %36 = vector.shape_cast %35 : vector<16xf32> to vector<16x1xf32>
    %37 = tpu.reciprocal %36 {approx = true} : vector<16x1xf32> -> vector<16x1xf32>
    %38 = vector.broadcast %37 : vector<16x1xf32> to vector<16x16xf32>
    %39 = arith.mulf %34, %38 : vector<16x16xf32>
    %40 = arith.truncf %39 : vector<16x16xf32> to vector<16x16xbf16>
    %cst_23 = arith.constant dense<0.000000e+00> : vector<16x8xf32>
    %41 = tpu.matmul %40, %28, %cst_23 {dimension_numbers = #tpu.dot_dimension_numbers<[1], [0], [0], [1], [0, 0, 1, 1], [], []>} : vector<16x16xbf16>, vector<16x8xbf16>, vector<16x8xf32> -> vector<16x8xf32>
    %42 = arith.truncf %41 : vector<16x8xf32> to vector<16x8xbf16>
    %c0_24 = arith.constant 0 : index
    %c8_25 = arith.constant 8 : index
    %43 = vector.load %arg8[%c0_24, %c8_25] : memref<16x32xbf16, #tpu.memory_space<vmem>>, vector<16x8xbf16>
    tpu.vector_store %arg8[%c0_24, %c8_25], %42 {strides = array<i32>} : memref<16x32xbf16, #tpu.memory_space<vmem>>, vector<16x8xbf16>,
    %c0_26 = arith.constant 0 : index
    %c16 = arith.constant 16 : index
    %44 = vector.load %arg7[%c0_26, %c16] : memref<16x96xbf16, #tpu.memory_space<vmem>>, vector<16x8xbf16>
    %c0_27 = arith.constant 0 : index
    %c48 = arith.constant 48 : index
    %45 = vector.load %arg7[%c0_27, %c48] : memref<16x96xbf16, #tpu.memory_space<vmem>>, vector<16x8xbf16>
    %c0_28 = arith.constant 0 : index
    %c80 = arith.constant 80 : index
    %46 = vector.load %arg7[%c0_28, %c80] : memref<16x96xbf16, #tpu.memory_space<vmem>>, vector<16x8xbf16>
    %cst_29 = arith.constant dense<0.000000e+00> : vector<16x16xf32>
    %47 = tpu.matmul %44, %45, %cst_29 {dimension_numbers = #tpu.dot_dimension_numbers<[1], [1], [0], [0], [0, 0, 1, 0], [], []>} : vector<16x8xbf16>, vector<16x8xbf16>, vector<16x16xf32> -> vector<16x16xf32>
    %cst_30 = arith.constant dense<0xFF800000> : vector<16xf32>
    %48 = vector.multi_reduction <maximumf>, %47, %cst_30 [1] : vector<16x16xf32> to vector<16xf32>
    %49 = vector.shape_cast %48 : vector<16xf32> to vector<16x1xf32>
    %50 = vector.broadcast %49 : vector<16x1xf32> to vector<16x16xf32>
    %51 = arith.subf %47, %50 : vector<16x16xf32>
    %52 = math.exp %51 : vector<16x16xf32>
    %cst_31 = arith.constant dense<0.000000e+00> : vector<16xf32>
    %53 = vector.multi_reduction <add>, %52, %cst_31 [1] : vector<16x16xf32> to vector<16xf32>
    %54 = vector.shape_cast %53 : vector<16xf32> to vector<16x1xf32>
    %55 = tpu.reciprocal %54 {approx = true} : vector<16x1xf32> -> vector<16x1xf32>
    %56 = vector.broadcast %55 : vector<16x1xf32> to vector<16x16xf32>
    %57 = arith.mulf %52, %56 : vector<16x16xf32>
    %58 = arith.truncf %57 : vector<16x16xf32> to vector<16x16xbf16>
    %cst_32 = arith.constant dense<0.000000e+00> : vector<16x8xf32>
    %59 = tpu.matmul %58, %46, %cst_32 {dimension_numbers = #tpu.dot_dimension_numbers<[1], [0], [0], [1], [0, 0, 1, 1], [], []>} : vector<16x16xbf16>, vector<16x8xbf16>, vector<16x8xf32> -> vector<16x8xf32>
    %60 = arith.truncf %59 : vector<16x8xf32> to vector<16x8xbf16>
    %c0_33 = arith.constant 0 : index
    %c16_34 = arith.constant 16 : index
    %61 = vector.load %arg8[%c0_33, %c16_34] : memref<16x32xbf16, #tpu.memory_space<vmem>>, vector<16x8xbf16>
    tpu.vector_store %arg8[%c0_33, %c16_34], %60 {strides = array<i32>} : memref<16x32xbf16, #tpu.memory_space<vmem>>, vector<16x8xbf16>,
    %c0_35 = arith.constant 0 : index
    %c24 = arith.constant 24 : index
    %62 = vector.load %arg7[%c0_35, %c24] : memref<16x96xbf16, #tpu.memory_space<vmem>>, vector<16x8xbf16>
    %c0_36 = arith.constant 0 : index
    %c56 = arith.constant 56 : index
    %63 = vector.load %arg7[%c0_36, %c56] : memref<16x96xbf16, #tpu.memory_space<vmem>>, vector<16x8xbf16>
    %c0_37 = arith.constant 0 : index
    %c88 = arith.constant 88 : index
    %64 = vector.load %arg7[%c0_37, %c88] : memref<16x96xbf16, #tpu.memory_space<vmem>>, vector<16x8xbf16>
    %cst_38 = arith.constant dense<0.000000e+00> : vector<16x16xf32>
    %65 = tpu.matmul %62, %63, %cst_38 {dimension_numbers = #tpu.dot_dimension_numbers<[1], [1], [0], [0], [0, 0, 1, 0], [], []>} : vector<16x8xbf16>, vector<16x8xbf16>, vector<16x16xf32> -> vector<16x16xf32>
    %cst_39 = arith.constant dense<0xFF800000> : vector<16xf32>
    %66 = vector.multi_reduction <maximumf>, %65, %cst_39 [1] : vector<16x16xf32> to vector<16xf32>
    %67 = vector.shape_cast %66 : vector<16xf32> to vector<16x1xf32>
    %68 = vector.broadcast %67 : vector<16x1xf32> to vector<16x16xf32>
    %69 = arith.subf %65, %68 : vector<16x16xf32>
    %70 = math.exp %69 : vector<16x16xf32>
    %cst_40 = arith.constant dense<0.000000e+00> : vector<16xf32>
    %71 = vector.multi_reduction <add>, %70, %cst_40 [1] : vector<16x16xf32> to vector<16xf32>
    %72 = vector.shape_cast %71 : vector<16xf32> to vector<16x1xf32>
    %73 = tpu.reciprocal %72 {approx = true} : vector<16x1xf32> -> vector<16x1xf32>
    %74 = vector.broadcast %73 : vector<16x1xf32> to vector<16x16xf32>
    %75 = arith.mulf %70, %74 : vector<16x16xf32>
    %76 = arith.truncf %75 : vector<16x16xf32> to vector<16x16xbf16>
    %cst_41 = arith.constant dense<0.000000e+00> : vector<16x8xf32>
    %77 = tpu.matmul %76, %64, %cst_41 {dimension_numbers = #tpu.dot_dimension_numbers<[1], [0], [0], [1], [0, 0, 1, 1], [], []>} : vector<16x16xbf16>, vector<16x8xbf16>, vector<16x8xf32> -> vector<16x8xf32>
    %78 = arith.truncf %77 : vector<16x8xf32> to vector<16x8xbf16>
    %c0_42 = arith.constant 0 : index
    %c24_43 = arith.constant 24 : index
    %79 = vector.load %arg8[%c0_42, %c24_43] : memref<16x32xbf16, #tpu.memory_space<vmem>>, vector<16x8xbf16>
    tpu.vector_store %arg8[%c0_42, %c24_43], %78 {strides = array<i32>} : memref<16x32xbf16, #tpu.memory_space<vmem>>, vector<16x8xbf16>,
    %c0_44 = arith.constant 0 : index
    %c0_45 = arith.constant 0 : index
    %80 = vector.load %arg8[%c0_44, %c0_45] : memref<16x32xbf16, #tpu.memory_space<vmem>>, vector<16x32xbf16>
    %c0_46 = arith.constant 0 : index
    %c0_47 = arith.constant 0 : index
    %81 = vector.load %arg4[%c0_46, %c0_47] : memref<32x32xbf16, #tpu.memory_space<vmem>>, vector<32x32xbf16>
    %cst_48 = arith.constant dense<0.000000e+00> : vector<16x32xf32>
    %82 = tpu.matmul %80, %81, %cst_48 {dimension_numbers = #tpu.dot_dimension_numbers<[1], [0], [0], [1], [0, 0, 1, 1], [], []>} : vector<16x32xbf16>, vector<32x32xbf16>, vector<16x32xf32> -> vector<16x32xf32>
    %c0_49 = arith.constant 0 : index
    %c0_50 = arith.constant 0 : index
    %83 = vector.load %arg5[%c0_49, %c0_50] : memref<1x32xf32, #tpu.memory_space<vmem>>, vector<1x32xf32>
    %84 = vector.broadcast %83 : vector<1x32xf32> to vector<16x32xf32>
    %85 = arith.addf %82, %84 : vector<16x32xf32>
    %c0_51 = arith.constant 0 : index
    %c0_52 = arith.constant 0 : index
    %86 = vector.load %arg6[%c0_51, %c0_52] : memref<16x32xf32, #tpu.memory_space<vmem>>, vector<16x32xf32>
    tpu.vector_store %arg6[%c0_51, %c0_52], %85 {strides = array<i32>} : memref<16x32xf32, #tpu.memory_space<vmem>>, vector<16x32xf32>,
    return
  }
  func.func @transform_0(%arg0: i32) -> (i32, i32) {
    %c0_i32 = arith.constant 0 : i32
    %c0_i32_0 = arith.constant 0 : i32
    return %arg0, %c0_i32 : i32, i32
  }
  func.func @transform_1(%arg0: i32) -> (i32, i32) {
    %c0_i32 = arith.constant 0 : i32
    %c0_i32_0 = arith.constant 0 : i32
    %c0_i32_1 = arith.constant 0 : i32
    return %c0_i32, %c0_i32_0 : i32, i32
  }
  func.func @transform_2(%arg0: i32) -> (i32, i32) {
    %c0_i32 = arith.constant 0 : i32
    %c0_i32_0 = arith.constant 0 : i32
    %c0_i32_1 = arith.constant 0 : i32
    return %c0_i32, %c0_i32_0 : i32, i32
  }
  func.func @transform_3(%arg0: i32) -> (i32, i32) {
    %c0_i32 = arith.constant 0 : i32
    %c0_i32_0 = arith.constant 0 : i32
    %c0_i32_1 = arith.constant 0 : i32
    return %c0_i32, %c0_i32_0 : i32, i32
  }
  func.func @transform_4(%arg0: i32) -> (i32, i32) {
    %c0_i32 = arith.constant 0 : i32
    %c0_i32_0 = arith.constant 0 : i32
    %c0_i32_1 = arith.constant 0 : i32
    return %c0_i32, %c0_i32_0 : i32, i32
  }
  func.func @transform_5(%arg0: i32) -> (i32, i32) {
    %c0_i32 = arith.constant 0 : i32
    %c0_i32_0 = arith.constant 0 : i32
    return %arg0, %c0_i32 : i32, i32
  }
}

</mosaic_0001>

<llo_original>
// kernel: tpu_custom_call.1
$region0: #{tpu_custom_call.1}
  #allocation0 [shape = 'u32[]', space=smem, size = 0x4, offset = 0x4, fixed_abs, tag = 'smem constant byte address 0x4 - core index']
  #allocation1 [shape = 'u32[144,128]{1,0:T(1,128)}', space=vmem, size = 0x12000, scoped, tag = 'internal scratch']
  #allocation2 [shape = 'bf16[16,96]{1,0:T(16,128)(2,1)}', space=vmem, size = 0x1000, scoped, tag = 'scratch operand']
  #allocation3 [shape = 'bf16[16,32]{1,0:T(16,128)(2,1)}', space=vmem, size = 0x1000, scoped, tag = 'scratch operand']
  %s0 = inlined_call_operand.hbm [shape: bf16[32,32], index: 0, kind: input, shape index: {}]
  %s1 = inlined_call_operand.hbm [shape: bf16[32,96], index: 1, kind: input, shape index: {}]
  %s2 = inlined_call_operand.vmem [shape: f32[1,96], index: 2, kind: input, shape index: {}]
  %s3 = inlined_call_operand.hbm [shape: bf16[32,32], index: 3, kind: input, shape index: {}]
  %s4 = inlined_call_operand.vmem [shape: f32[1,32], index: 4, kind: input, shape index: {}]
  %s5 = inlined_call_operand.hbm [shape: f32[32,32], index: 5, kind: output, shape index: {}]
  %s6 = sld [smem:[#allocation0]]
  $region65: #{tpu_custom_call.1} parent=0
    _
  %s8 = ssub.s32 1, %s6
  %s9 = scalar_select 0, %s8, %s6
  $region1: #{tpu_custom_call.1} parent=0
    #allocation4 [shape = 'u8[8192]{0}', space=vmem, size = 0x2000, scoped, tag = 'input window, operand 0']
    #allocation5 [shape = 's32[2]{0}', space=sflag, size = 0x8, scoped, tag = 'scoped memory for tpu_custom_call.1']
    #allocation6 [shape = 's32[2]{0}', space=sflag, size = 0x8, scoped, tag = 'scoped memory for tpu_custom_call.1']
    #allocation7 [shape = 'u8[8192]{0}', space=vmem, size = 0x2000, scoped, tag = 'input window, operand 1, single buffered']
    #allocation8 [shape = 's32[1]{0}', space=sflag, size = 0x4, scoped, tag = 'scoped memory for tpu_custom_call.1']
    #allocation9 [shape = 'u8[8192]{0}', space=vmem, size = 0x2000, scoped, tag = 'input window, operand 3, single buffered']
    #allocation10 [shape = 'u8[16384]{0}', space=vmem, size = 0x4000, scoped, tag = 'output window, operand 0']
    %10 = vsyncpa [#allocation5], 0
    %s11 = scalar_lea.sflag [#allocation5], 1
    %12 = vsyncpa %s11, 0
    %13 = vsyncpa [#allocation8], 0
    %14 = vsyncpa [#allocation6], 0
    %s15 = scalar_lea.sflag [#allocation6], 1
    %16 = vsyncpa %s15, 0
    loop: start=0, step=1, limit=4
    $region2: #{tpu_custom_call.1} parent=1 // loop_pre_header
      _
    $region3: #{tpu_custom_call.1} parent=1 // loop_header
      %s18 = sphi 0, %s22
      %p19 = scmp.ge.s32.totalorder %s18, 4
      %s28 = sphi 0, %s30
      %s31 = sphi 0, %s28
      %s32 = sphi 0, %s31
      %s48 = sphi 0, %s32
      %s52 = sphi 0, %s52
      %s54 = sphi 0, %s52
      %s55 = sphi 0, %s54
      %s69 = sphi 0, %s55
      %s73 = sphi 0, %s73
      %s75 = sphi 0, %s73
      %s76 = sphi 0, %s75
      %s90 = sphi 0, %s76
      %s94 = sphi 0, %s94
      %s96 = sphi 0, %s94
      %s97 = sphi 0, %s96
      %s111 = sphi 0, %s97
      %s115 = sphi 0, %s115
      %s117 = sphi 0, %s115
      %s118 = sphi 0, %s117
      %s132 = sphi 0, %s118
      %s138 = sphi 0, %s140
      %s141 = sphi 0, %s138
      %s142 = sphi 0, %s141
      %s158 = sphi 0, %s142
    $region4: #{tpu_custom_call.1} parent=1 // loop_header_branch
      %21 = sbr.rel (%p19) target = $region8
    $region5: #{tpu_custom_call.1} parent=1 // loop_body
      %s23 = ssub.s32 %s18, 1
      %s24 = ssub.s32 %s18, 2
      %s25 = sadd.s32 %s18, 1
      %s26 = ssub.s32 %s18, %s25
      %p27 = scmp.eq.s32.totalorder %s26, 0
      %s29 = sadd.s32 %s28, 1
      %s30 = scalar_select %p27, %s28, %s29
      %p33 = pneg %p27
      %p34 = scmp.eq.s32.totalorder %s18, 1
      %p35 = por %p33, %p34
      %p36 = scmp.ne.s32.totalorder %s28, %s31
      %p37 = scmp.eq.s32.totalorder %s18, 0
      %p38 = por %p36, %p37
      %p39 = scmp.ne.s32.totalorder %s28, %s31
      %p40 = scmp.eq.s32.totalorder %s23, 1
      %p41 = por %p39, %p40
      %p42 = scmp.ne.s32.totalorder %s31, %s32
      %p43 = scmp.eq.s32.totalorder %s23, 0
      %p44 = por %p42, %p43
      %p45 = scmp.ne.s32.totalorder %s31, %s32
      %p46 = scmp.eq.s32.totalorder %s24, 1
      %p47 = por %p45, %p46
      %p49 = scmp.ne.s32.totalorder %s32, %s48
      %p50 = scmp.eq.s32.totalorder %s24, 0
      %p51 = por %p49, %p50
      %s53 = sadd.s32 %s52, 1
      %p56 = scmp.eq.s32.totalorder %s18, 1
      %p57 = scmp.ne.s32.totalorder %s52, %s54
      %p58 = scmp.eq.s32.totalorder %s18, 0
      %p59 = por %p57, %p58
      %p60 = scmp.ne.s32.totalorder %s52, %s54
      %p61 = scmp.eq.s32.totalorder %s23, 1
      %p62 = por %p60, %p61
      %p63 = scmp.ne.s32.totalorder %s54, %s55
      %p64 = scmp.eq.s32.totalorder %s23, 0
      %p65 = por %p63, %p64
      %p66 = scmp.ne.s32.totalorder %s54, %s55
      %p67 = scmp.eq.s32.totalorder %s24, 1
      %p68 = por %p66, %p67
      %p70 = scmp.ne.s32.totalorder %s55, %s69
      %p71 = scmp.eq.s32.totalorder %s24, 0
      %p72 = por %p70, %p71
      %s74 = sadd.s32 %s73, 1
      %p77 = scmp.eq.s32.totalorder %s18, 1
      %p78 = scmp.ne.s32.totalorder %s73, %s75
      %p79 = scmp.eq.s32.totalorder %s18, 0
      %p80 = por %p78, %p79
      %p81 = scmp.ne.s32.totalorder %s73, %s75
      %p82 = scmp.eq.s32.totalorder %s23, 1
      %p83 = por %p81, %p82
      %p84 = scmp.ne.s32.totalorder %s75, %s76
      %p85 = scmp.eq.s32.totalorder %s23, 0
      %p86 = por %p84, %p85
      %p87 = scmp.ne.s32.totalorder %s75, %s76
      %p88 = scmp.eq.s32.totalorder %s24, 1
      %p89 = por %p87, %p88
      %p91 = scmp.ne.s32.totalorder %s76, %s90
      %p92 = scmp.eq.s32.totalorder %s24, 0
      %p93 = por %p91, %p92
      %s95 = sadd.s32 %s94, 1
      %p98 = scmp.eq.s32.totalorder %s18, 1
      %p99 = scmp.ne.s32.totalorder %s94, %s96
      %p100 = scmp.eq.s32.totalorder %s18, 0
      %p101 = por %p99, %p100
      %p102 = scmp.ne.s32.totalorder %s94, %s96
      %p103 = scmp.eq.s32.totalorder %s23, 1
      %p104 = por %p102, %p103
      %p105 = scmp.ne.s32.totalorder %s96, %s97
      %p106 = scmp.eq.s32.totalorder %s23, 0
      %p107 = por %p105, %p106
      %p108 = scmp.ne.s32.totalorder %s96, %s97
      %p109 = scmp.eq.s32.totalorder %s24, 1
      %p110 = por %p108, %p109
      %p112 = scmp.ne.s32.totalorder %s97, %s111
      %p113 = scmp.eq.s32.totalorder %s24, 0
      %p114 = por %p112, %p113
      %s116 = sadd.s32 %s115, 1
      %p119 = scmp.eq.s32.totalorder %s18, 1
      %p120 = scmp.ne.s32.totalorder %s115, %s117
      %p121 = scmp.eq.s32.totalorder %s18, 0
      %p122 = por %p120, %p121
      %p123 = scmp.ne.s32.totalorder %s115, %s117
      %p124 = scmp.eq.s32.totalorder %s23, 1
      %p125 = por %p123, %p124
      %p126 = scmp.ne.s32.totalorder %s117, %s118
      %p127 = scmp.eq.s32.totalorder %s23, 0
      %p128 = por %p126, %p127
      %p129 = scmp.ne.s32.totalorder %s117, %s118
      %p130 = scmp.eq.s32.totalorder %s24, 1
      %p131 = por %p129, %p130
      %p133 = scmp.ne.s32.totalorder %s118, %s132
      %p134 = scmp.eq.s32.totalorder %s24, 0
      %p135 = por %p133, %p134
      %s136 = ssub.s32 %s18, %s25
      %p137 = scmp.eq.s32.totalorder %s136, 0
      %s139 = sadd.s32 %s138, 1
      %s140 = scalar_select %p137, %s138, %s139
      %p143 = pneg %p137
      %p144 = scmp.eq.s32.totalorder %s18, 1
      %p145 = por %p143, %p144
      %p146 = scmp.ne.s32.totalorder %s138, %s141
      %p147 = scmp.eq.s32.totalorder %s18, 0
      %p148 = por %p146, %p147
      %p149 = scmp.ne.s32.totalorder %s138, %s141
      %p150 = scmp.eq.s32.totalorder %s23, 1
      %p151 = por %p149, %p150
      %p152 = scmp.ne.s32.totalorder %s141, %s142
      %p153 = scmp.eq.s32.totalorder %s23, 0
      %p154 = por %p152, %p153
      %p155 = scmp.ne.s32.totalorder %s141, %s142
      %p156 = scmp.eq.s32.totalorder %s24, 1
      %p157 = por %p155, %p156
      %p159 = scmp.ne.s32.totalorder %s142, %s158
      %p160 = scmp.eq.s32.totalorder %s24, 0
      %p161 = por %p159, %p160
      %p162 = scmp.le.s32.totalorder 1, %s18
      %p163 = scmp.lt.s32.totalorder %s18, 3
      %p164 = pnand %p162, %p163
      %p165 = pneg %p164
      // Predicated region
      $region9: #{tpu_custom_call.1} parent=5 // pred_check
        _
      $region10: #{tpu_custom_call.1} parent=5 // pred_check_branch
        %167 = sbr.rel (%p164) target = $region12
      $region11: #{tpu_custom_call.1} parent=5 // pred_region
        %s168 = ssub.s32 %s18, 1
        // Predicated region
        $region13: #{tpu_custom_call.1} parent=11 // pred_check
          %p169 = pneg %p65
        $region14: #{tpu_custom_call.1} parent=11 // pred_check_branch
          %171 = sbr.rel (%p169) target = $region16
        $region15: #{tpu_custom_call.1} parent=11 // pred_region
          %s173 = ssub.s32 256, 256
          %174 = vsyncadd [#allocation8], %s173
          %s175 = sshll.u32 [#allocation7], 4
          %s176 = int_to_ptr.vmem [resolvable:$true] %s175
          %181 = dma.hbm_to_vmem [thread:$0]  %s1, 256, %s176, [#allocation8], 64, 64, 4
        $region16: #{tpu_custom_call.1} parent=11 // pred_fallthru
          _
        // Predicated region
        $region17: #{tpu_custom_call.1} parent=11 // pred_check
          %p182 = pneg %p86
        $region18: #{tpu_custom_call.1} parent=11 // pred_check_branch
          %184 = sbr.rel (%p182) target = $region20
        $region19: #{tpu_custom_call.1} parent=11 // pred_region
          _
        $region20: #{tpu_custom_call.1} parent=11 // pred_fallthru
          _
        // Predicated region
        $region21: #{tpu_custom_call.1} parent=11 // pred_check
          %p185 = pneg %p107
        $region22: #{tpu_custom_call.1} parent=11 // pred_check_branch
          %187 = sbr.rel (%p185) target = $region24
        $region23: #{tpu_custom_call.1} parent=11 // pred_region
          %s189 = ssub.s32 256, 256
          %190 = vsyncadd [#allocation8], %s189
          %s191 = sshll.u32 [#allocation9], 4
          %s192 = int_to_ptr.vmem [resolvable:$true] %s191
          %197 = dma.hbm_to_vmem [thread:$0]  %s3, 256, %s192, [#allocation8], 64, 64, 4
        $region24: #{tpu_custom_call.1} parent=11 // pred_fallthru
          _
        // Predicated region
        $region25: #{tpu_custom_call.1} parent=11 // pred_check
          %p198 = pneg %p128
        $region26: #{tpu_custom_call.1} parent=11 // pred_check_branch
          %200 = sbr.rel (%p198) target = $region28
        $region27: #{tpu_custom_call.1} parent=11 // pred_region
          _
        $region28: #{tpu_custom_call.1} parent=11 // pred_fallthru
          _
      $region12: #{tpu_custom_call.1} parent=5 // pred_fallthru
        _
      %p201 = scmp.lt.s32.totalorder %s18, 2
      // Predicated region
      $region29: #{tpu_custom_call.1} parent=5 // pred_check
        %p202 = pneg %p201
      $region30: #{tpu_custom_call.1} parent=5 // pred_check_branch
        %204 = sbr.rel (%p202) target = $region32
      $region31: #{tpu_custom_call.1} parent=5 // pred_region
        // Predicated region
        $region33: #{tpu_custom_call.1} parent=31 // pred_check
          %p205 = pneg %p38
        $region34: #{tpu_custom_call.1} parent=31 // pred_check_branch
          %207 = sbr.rel (%p205) target = $region36
        $region35: #{tpu_custom_call.1} parent=31 // pred_region
          %s208 = sand.u32 %s28, 1
          %s209 = scalar_lea.sflag [#allocation5], %s208
          %s210 = sand.u32 %s28, 1
          %s211 = smul.addr %s210, 8
          %s212 = scalar_lea.vmem [#allocation4], %s211
          %s213 = smul.u32 2, %s18
          %s215 = ssub.s32 128, 128
          %216 = vsyncadd %s209, %s215
          %s217 = smul.addr %s213, 64
          %s218 = scalar_lea.hbm %s0, %s217
          %s219 = sshll.u32 %s212, 4
          %s220 = int_to_ptr.vmem [resolvable:$true] %s219
          %225 = dma.hbm_to_vmem [thread:$0]  %s218, 128, %s220, %s209, 64, 64, 4
        $region36: #{tpu_custom_call.1} parent=31 // pred_fallthru
          _
      $region32: #{tpu_custom_call.1} parent=5 // pred_fallthru
        _
      %p226 = scmp.le.s32.totalorder 1, %s18
      %p227 = scmp.lt.s32.totalorder %s18, 3
      %p228 = pnand %p226, %p227
      %p229 = pneg %p228
      // Predicated region
      $region37: #{tpu_custom_call.1} parent=5 // pred_check
        _
      $region38: #{tpu_custom_call.1} parent=5 // pred_check_branch
        %231 = sbr.rel (%p228) target = $region40
      $region39: #{tpu_custom_call.1} parent=5 // pred_region
        %s232 = ssub.s32 %s18, 1
        %s233 = sand.u32 %s31, 1
        %s234 = scalar_lea.sflag [#allocation5], %s233
        %s235 = sand.u32 %s31, 1
        %s236 = smul.addr %s235, 8
        %s237 = scalar_lea.vmem [#allocation4], %s236
        // Predicated region
        $region41: #{tpu_custom_call.1} parent=39 // pred_check
          %p238 = pneg %p44
        $region42: #{tpu_custom_call.1} parent=39 // pred_check_branch
          %240 = sbr.rel (%p238) target = $region44
        $region43: #{tpu_custom_call.1} parent=39 // pred_region
          %241 = dma.done %s234, 128
        $region44: #{tpu_custom_call.1} parent=39 // pred_fallthru
          _
        // Predicated region
        $region45: #{tpu_custom_call.1} parent=39 // pred_check
          %p242 = pneg %p65
        $region46: #{tpu_custom_call.1} parent=39 // pred_check_branch
          %244 = sbr.rel (%p242) target = $region48
        $region47: #{tpu_custom_call.1} parent=39 // pred_region
          %245 = dma.done [#allocation8], 256
        $region48: #{tpu_custom_call.1} parent=39 // pred_fallthru
          _
        // Predicated region
        $region49: #{tpu_custom_call.1} parent=39 // pred_check
          %p246 = pneg %p107
        $region50: #{tpu_custom_call.1} parent=39 // pred_check_branch
          %248 = sbr.rel (%p246) target = $region52
        $region51: #{tpu_custom_call.1} parent=39 // pred_region
          %249 = dma.done [#allocation8], 256
        $region52: #{tpu_custom_call.1} parent=39 // pred_fallthru
          _
        %s250 = sand.u32 %s31, 1
        %s251 = scalar_lea.sflag [#allocation5], %s250
        %s252 = sand.u32 %s31, 1
        %s253 = smul.addr %s252, 8
        %s254 = scalar_lea.vmem [#allocation4], %s253
        %p255 = pneg %p44
        %p256 = pneg %p41
        %p257 = pneg %p65
        %p258 = pneg %p62
        %p259 = pneg %p86
        %p260 = pneg %p83
        %p261 = pneg %p107
        %p262 = pneg %p104
        %p263 = pneg %p128
        %p264 = pneg %p125
        %p265 = pneg %p154
        %p266 = pneg %p151
        %s267 = sand.u32 %s141, 1
        %s268 = scalar_lea.sflag [#allocation6], %s267
        %s269 = sand.u32 %s141, 1
        %s270 = smul.addr %s269, 16
        %s271 = scalar_lea.vmem [#allocation10], %s270
        %s272 = smul.u32 2, %s23
        %s273 = smul.u32 2, %s23
        %v275 = vld [vmem:[%s237] sm:$0xf]
        %v276 = vld [vmem:[%s237 + $0x4] sm:$0xf]
        %v277 = vld [vmem:[#allocation7] sm:$0xf]
        %v278 = vld [vmem:[#allocation7 + $0x4] sm:$0xf]
        %v279 = vld [vmem:[#allocation7 + $0x8] sm:$0xf]
        %v280 = vld [vmem:[#allocation7 + $0xc] sm:$0xf]
        %v281 = vld [vmem:[%s2] sm:$0x1]
        %v283 = vlaneseq
        %v284 = vshrl.u32 %v283, 7
        %v285 = vsub.s32 0, %v284
        %v286 = vrot.slane %v281, %v285
        %v290 = vunpack.c.l.b16 %v275
        %v291 = vunpack.c.l.b16 %v276
        %v292 = vpack.c.b16 %v291, %v290
        %v297 = vunpack.c.l.b16 %v277
        %v298 = vunpack.c.l.b16 %v278
        %v299 = vunpack.c.l.b16 %v279
        %v300 = vunpack.c.l.b16 %v280
        %v301 = vpack.c.b16 %v298, %v297
        %v302 = vpack.c.b16 %v300, %v299
        %vm305 = vcmask 261120
        %v307 = vsel %vm305, %v292, 0
        %309 = vmatprep.subr.bf16.mxu0 0
        %310 = vmatpush1.bf16.msra.mxu0 %v301
        %311 = vmatprep.subr.bf16.mxu0 0
        %312 = vmatpush1.bf16.msra.mxu0 %v302
        %313 = vmatprep.subr.bf16.mxu0 0
        %314 = vmatpush1.bf16.msra.mxu0 0
        %315 = vmatprep.subr.bf16.mxu0 0
        %316 = vmatpush1.bf16.msra.mxu0 0
        %317 = vmatprep.subr.bf16.mxu0 0
        %318 = vmatpush1.bf16.msra.mxu0 0
        %319 = vmatprep.subr.bf16.mxu0 0
        %320 = vmatpush1.bf16.msra.mxu0 0
        %321 = vmatprep.subr.bf16.mxu0 0
        %322 = vmatpush1.bf16.msra.mxu0 0
        %323 = vmatprep.subr.bf16.mxu0 0
        %324 = vmatpush1.bf16.msra.mxu0 0
        %325 = vmatprep.subr.bf16.mxu0 0
        %326 = vmatpush1.bf16.msra.mxu0 0
        %327 = vmatprep.subr.bf16.mxu0 0
        %328 = vmatpush1.bf16.msra.mxu0 0
        %329 = vmatprep.subr.bf16.mxu0 0
        %330 = vmatpush1.bf16.msra.mxu0 0
        %331 = vmatprep.subr.bf16.mxu0 0
        %332 = vmatpush1.bf16.msra.mxu0 0
        %333 = vmatprep.subr.bf16.mxu0 0
        %334 = vmatpush1.bf16.msra.mxu0 0
        %335 = vmatprep.subr.bf16.mxu0 0
        %336 = vmatpush1.bf16.msra.mxu0 0
        %337 = vmatprep.subr.bf16.mxu0 0
        %338 = vmatpush1.bf16.msra.mxu0 0
        %339 = vmatprep.subr.bf16.mxu0 0
        %340 = vmatpush1.bf16.msra.mxu0 0
        %341 = vmatprep.mubr.bf16.mxu0 0
        %342 = vmatmul.mubr.bf16.gmra.mrb[0].mxu0 %v307
        %v343 = vpop.f32.mrb[0].mxu0
        %v344 = vadd.f32 %v286, %v343
        %v345 = vpop.f32.mrb[0].mxu0
        %v346 = vpop.f32.mrb[0].mxu0
        %v347 = vadd.f32 %v286, %v346
        %v348 = vpop.f32.mrb[0].mxu0
        %349 = vdwg.mxu0
        %v350 = vpack.c.bf16 %v347, %v344
        %vm351 = vcmask 785408
        %352 = vst.msk [vmem:[#allocation2] sm:$0xff] %vm351, %v350
        %v353 = vld [vmem:[#allocation2] sm:$0xff]
        %355 = vrot.lane.b32.xlu0 %v353, 96
        %v356 = vpop.permute.xlu0 %355
        %vm357 = vcmask 64512
        %v359 = vsel %vm357, %v353, 0
        %v362 = vsel %vm357, %v356, 0
        %364 = vmatprep.subr.bf16.mxu0 0
        %365 = vmatpush1.bf16.xpose.msra.mxu0 %v362
        %366 = vmatprep.subr.bf16.mxu0 0
        %367 = vmatpush1.bf16.xpose.msra.mxu0 0
        %368 = vmatprep.subr.bf16.mxu0 0
        %369 = vmatpush1.bf16.xpose.msra.mxu0 0
        %370 = vmatprep.subr.bf16.mxu0 0
        %371 = vmatpush1.bf16.xpose.msra.mxu0 0
        %372 = vmatprep.subr.bf16.mxu0 0
        %373 = vmatpush1.bf16.xpose.msra.mxu0 0
        %374 = vmatprep.subr.bf16.mxu0 0
        %375 = vmatpush1.bf16.xpose.msra.mxu0 0
        %376 = vmatprep.subr.bf16.mxu0 0
        %377 = vmatpush1.bf16.xpose.msra.mxu0 0
        %378 = vmatprep.subr.bf16.mxu0 0
        %379 = vmatpush1.bf16.xpose.msra.mxu0 0
        %380 = vmatprep.subr.bf16.mxu0 0
        %381 = vmatpush1.bf16.xpose.msra.mxu0 0
        %382 = vmatprep.subr.bf16.mxu0 0
        %383 = vmatpush1.bf16.xpose.msra.mxu0 0
        %384 = vmatprep.subr.bf16.mxu0 0
        %385 = vmatpush1.bf16.xpose.msra.mxu0 0
        %386 = vmatprep.subr.bf16.mxu0 0
        %387 = vmatpush1.bf16.xpose.msra.mxu0 0
        %388 = vmatprep.subr.bf16.mxu0 0
        %389 = vmatpush1.bf16.xpose.msra.mxu0 0
        %390 = vmatprep.subr.bf16.mxu0 0
        %391 = vmatpush1.bf16.xpose.msra.mxu0 0
        %392 = vmatprep.subr.bf16.mxu0 0
        %393 = vmatpush1.bf16.xpose.msra.mxu0 0
        %394 = vmatprep.subr.bf16.mxu0 0
        %395 = vmatpush1.bf16.xpose.msra.mxu0 0
        %396 = vmatprep.mubr.bf16.mxu0 0
        %397 = vmatmul.mubr.bf16.gmra.mrb[0].mxu0 %v359
        %v398 = vpop.f32.mrb[0].mxu0
        %v399 = vadd.f32 0.0, %v398
        %v400 = vpop.f32.mrb[0].mxu0
        %v401 = vpop.f32.mrb[0].mxu0
        %v402 = vadd.f32 0.0, %v401
        %v403 = vpop.f32.mrb[0].mxu0
        %404 = vdwg.mxu0
        %vm405 = vcmask 130048
        %v406 = vsel %vm405, %v399, -inf
        %407 = vmax.xlane.f32.xlu0 %v406
        %v408 = vpop.xlane.xlu0 %407
        %v409 = vsel %vm405, %v402, -inf
        %410 = vmax.xlane.f32.xlu0 %v409
        %v411 = vpop.xlane.xlu0 %410
        %v412 = vsub.f32 %v399, %v408
        %v413 = vsub.f32 %v402, %v411
        %v414 = vmul.f32 %v412, 1.442695
        %v415 = vpow.pop %v414
        %v416 = vmul.f32 %v413, 1.442695
        %v417 = vpow.pop %v416
        %v418 = vsel %vm405, %v415, 0.0
        %419 = vadd.xlane.f32.xlu0 %v418
        %v420 = vpop.xlane.xlu0 %419
        %v421 = vsel %vm405, %v417, 0.0
        %422 = vadd.xlane.f32.xlu0 %v421
        %v423 = vpop.xlane.xlu0 %422
        %v424 = vrcp.pop %v420
        %v425 = vrcp.pop %v423
        %v426 = vmul.f32 %v415, %v424
        %v427 = vmul.f32 %v417, %v425
        %v428 = vpack.c.bf16 %v427, %v426
        %429 = vrot.lane.b32.xlu0 %v353, 64
        %v430 = vpop.permute.xlu0 %429
        %v433 = vsel %vm405, %v428, 0
        %435 = vmatprep.subr.bf16.mxu0 0
        %436 = vmatpush1.bf16.msra.mxu0 %v430
        %437 = vmatprep.subr.bf16.mxu0 0
        %438 = vmatpush1.bf16.msra.mxu0 0
        %439 = vmatprep.subr.bf16.mxu0 0
        %440 = vmatpush1.bf16.msra.mxu0 0
        %441 = vmatprep.subr.bf16.mxu0 0
        %442 = vmatpush1.bf16.msra.mxu0 0
        %443 = vmatprep.subr.bf16.mxu0 0
        %444 = vmatpush1.bf16.msra.mxu0 0
        %445 = vmatprep.subr.bf16.mxu0 0
        %446 = vmatpush1.bf16.msra.mxu0 0
        %447 = vmatprep.subr.bf16.mxu0 0
        %448 = vmatpush1.bf16.msra.mxu0 0
        %449 = vmatprep.subr.bf16.mxu0 0
        %450 = vmatpush1.bf16.msra.mxu0 0
        %451 = vmatprep.subr.bf16.mxu0 0
        %452 = vmatpush1.bf16.msra.mxu0 0
        %453 = vmatprep.subr.bf16.mxu0 0
        %454 = vmatpush1.bf16.msra.mxu0 0
        %455 = vmatprep.subr.bf16.mxu0 0
        %456 = vmatpush1.bf16.msra.mxu0 0
        %457 = vmatprep.subr.bf16.mxu0 0
        %458 = vmatpush1.bf16.msra.mxu0 0
        %459 = vmatprep.subr.bf16.mxu0 0
        %460 = vmatpush1.bf16.msra.mxu0 0
        %461 = vmatprep.subr.bf16.mxu0 0
        %462 = vmatpush1.bf16.msra.mxu0 0
        %463 = vmatprep.subr.bf16.mxu0 0
        %464 = vmatpush1.bf16.msra.mxu0 0
        %465 = vmatprep.subr.bf16.mxu0 0
        %466 = vmatpush1.bf16.msra.mxu0 0
        %467 = vmatprep.mubr.bf16.mxu0 0
        %468 = vmatmul.mubr.bf16.gmra.mrb[0].mxu0 %v433
        %v469 = vpop.f32.mrb[0].mxu0
        %v470 = vadd.f32 0.0, %v469
        %v471 = vpop.f32.mrb[0].mxu0
        %v472 = vpop.f32.mrb[0].mxu0
        %v473 = vadd.f32 0.0, %v472
        %v474 = vpop.f32.mrb[0].mxu0
        %475 = vdwg.mxu0
        %v476 = vpack.c.bf16 %v473, %v470
        %477 = vst.msk [vmem:[#allocation3] sm:$0xff] %vm357, %v476
        %v478 = vld [vmem:[#allocation2] sm:$0xff]
        %480 = vrot.lane.b32.xlu0 %v478, 120
        %v481 = vpop.permute.xlu0 %480
        %482 = vrot.lane.b32.xlu0 %v478, 88
        %v483 = vpop.permute.xlu0 %482
        %v485 = vsel %vm357, %v481, 0
        %v488 = vsel %vm357, %v483, 0
        %490 = vmatprep.subr.bf16.mxu0 0
        %491 = vmatpush1.bf16.xpose.msra.mxu0 %v488
        %492 = vmatprep.subr.bf16.mxu0 0
        %493 = vmatpush1.bf16.xpose.msra.mxu0 0
        %494 = vmatprep.subr.bf16.mxu0 0
        %495 = vmatpush1.bf16.xpose.msra.mxu0 0
        %496 = vmatprep.subr.bf16.mxu0 0
        %497 = vmatpush1.bf16.xpose.msra.mxu0 0
        %498 = vmatprep.subr.bf16.mxu0 0
        %499 = vmatpush1.bf16.xpose.msra.mxu0 0
        %500 = vmatprep.subr.bf16.mxu0 0
        %501 = vmatpush1.bf16.xpose.msra.mxu0 0
        %502 = vmatprep.subr.bf16.mxu0 0
        %503 = vmatpush1.bf16.xpose.msra.mxu0 0
        %504 = vmatprep.subr.bf16.mxu0 0
        %505 = vmatpush1.bf16.xpose.msra.mxu0 0
        %506 = vmatprep.subr.bf16.mxu0 0
        %507 = vmatpush1.bf16.xpose.msra.mxu0 0
        %508 = vmatprep.subr.bf16.mxu0 0
        %509 = vmatpush1.bf16.xpose.msra.mxu0 0
        %510 = vmatprep.subr.bf16.mxu0 0
        %511 = vmatpush1.bf16.xpose.msra.mxu0 0
        %512 = vmatprep.subr.bf16.mxu0 0
        %513 = vmatpush1.bf16.xpose.msra.mxu0 0
        %514 = vmatprep.subr.bf16.mxu0 0
        %515 = vmatpush1.bf16.xpose.msra.mxu0 0
        %516 = vmatprep.subr.bf16.mxu0 0
        %517 = vmatpush1.bf16.xpose.msra.mxu0 0
        %518 = vmatprep.subr.bf16.mxu0 0
        %519 = vmatpush1.bf16.xpose.msra.mxu0 0
        %520 = vmatprep.subr.bf16.mxu0 0
        %521 = vmatpush1.bf16.xpose.msra.mxu0 0
        %522 = vmatprep.mubr.bf16.mxu0 0
        %523 = vmatmul.mubr.bf16.gmra.mrb[0].mxu0 %v485
        %v524 = vpop.f32.mrb[0].mxu0
        %v525 = vadd.f32 0.0, %v524
        %v526 = vpop.f32.mrb[0].mxu0
        %v527 = vpop.f32.mrb[0].mxu0
        %v528 = vadd.f32 0.0, %v527
        %v529 = vpop.f32.mrb[0].mxu0
        %530 = vdwg.mxu0
        %v531 = vsel %vm405, %v525, -inf
        %532 = vmax.xlane.f32.xlu0 %v531
        %v533 = vpop.xlane.xlu0 %532
        %v534 = vsel %vm405, %v528, -inf
        %535 = vmax.xlane.f32.xlu0 %v534
        %v536 = vpop.xlane.xlu0 %535
        %v537 = vsub.f32 %v525, %v533
        %v538 = vsub.f32 %v528, %v536
        %v539 = vmul.f32 %v537, 1.442695
        %v540 = vpow.pop %v539
        %v541 = vmul.f32 %v538, 1.442695
        %v542 = vpow.pop %v541
        %v543 = vsel %vm405, %v540, 0.0
        %544 = vadd.xlane.f32.xlu0 %v543
        %v545 = vpop.xlane.xlu0 %544
        %v546 = vsel %vm405, %v542, 0.0
        %547 = vadd.xlane.f32.xlu0 %v546
        %v548 = vpop.xlane.xlu0 %547
        %v549 = vrcp.pop %v545
        %v550 = vrcp.pop %v548
        %v551 = vmul.f32 %v540, %v549
        %v552 = vmul.f32 %v542, %v550
        %v553 = vpack.c.bf16 %v552, %v551
        %554 = vrot.lane.b32.xlu0 %v478, 56
        %v555 = vpop.permute.xlu0 %554
        %v558 = vsel %vm405, %v553, 0
        %560 = vmatprep.subr.bf16.mxu0 0
        %561 = vmatpush1.bf16.msra.mxu0 %v555
        %562 = vmatprep.subr.bf16.mxu0 0
        %563 = vmatpush1.bf16.msra.mxu0 0
        %564 = vmatprep.subr.bf16.mxu0 0
        %565 = vmatpush1.bf16.msra.mxu0 0
        %566 = vmatprep.subr.bf16.mxu0 0
        %567 = vmatpush1.bf16.msra.mxu0 0
        %568 = vmatprep.subr.bf16.mxu0 0
        %569 = vmatpush1.bf16.msra.mxu0 0
        %570 = vmatprep.subr.bf16.mxu0 0
        %571 = vmatpush1.bf16.msra.mxu0 0
        %572 = vmatprep.subr.bf16.mxu0 0
        %573 = vmatpush1.bf16.msra.mxu0 0
        %574 = vmatprep.subr.bf16.mxu0 0
        %575 = vmatpush1.bf16.msra.mxu0 0
        %576 = vmatprep.subr.bf16.mxu0 0
        %577 = vmatpush1.bf16.msra.mxu0 0
        %578 = vmatprep.subr.bf16.mxu0 0
        %579 = vmatpush1.bf16.msra.mxu0 0
        %580 = vmatprep.subr.bf16.mxu0 0
        %581 = vmatpush1.bf16.msra.mxu0 0
        %582 = vmatprep.subr.bf16.mxu0 0
        %583 = vmatpush1.bf16.msra.mxu0 0
        %584 = vmatprep.subr.bf16.mxu0 0
        %585 = vmatpush1.bf16.msra.mxu0 0
        %586 = vmatprep.subr.bf16.mxu0 0
        %587 = vmatpush1.bf16.msra.mxu0 0
        %588 = vmatprep.subr.bf16.mxu0 0
        %589 = vmatpush1.bf16.msra.mxu0 0
        %590 = vmatprep.subr.bf16.mxu0 0
        %591 = vmatpush1.bf16.msra.mxu0 0
        %592 = vmatprep.mubr.bf16.mxu0 0
        %593 = vmatmul.mubr.bf16.gmra.mrb[0].mxu0 %v558
        %v594 = vpop.f32.mrb[0].mxu0
        %v595 = vadd.f32 0.0, %v594
        %v596 = vpop.f32.mrb[0].mxu0
        %v597 = vpop.f32.mrb[0].mxu0
        %v598 = vadd.f32 0.0, %v597
        %v599 = vpop.f32.mrb[0].mxu0
        %600 = vdwg.mxu0
        %v601 = vpack.c.bf16 %v598, %v595
        %603 = vrot.lane.b32.xlu0 %v601, 8
        %v604 = vpop.permute.xlu0 %603
        %vm606 = vcmask 130112
        %607 = vst.msk [vmem:[#allocation3] sm:$0xff] %vm606, %v604
        %v608 = vld [vmem:[#allocation2] sm:$0xff]
        %610 = vrot.lane.b32.xlu0 %v608, 112
        %v611 = vpop.permute.xlu0 %610
        %612 = vrot.lane.b32.xlu0 %v608, 80
        %v613 = vpop.permute.xlu0 %612
        %v615 = vsel %vm357, %v611, 0
        %v618 = vsel %vm357, %v613, 0
        %620 = vmatprep.subr.bf16.mxu0 0
        %621 = vmatpush1.bf16.xpose.msra.mxu0 %v618
        %622 = vmatprep.subr.bf16.mxu0 0
        %623 = vmatpush1.bf16.xpose.msra.mxu0 0
        %624 = vmatprep.subr.bf16.mxu0 0
        %625 = vmatpush1.bf16.xpose.msra.mxu0 0
        %626 = vmatprep.subr.bf16.mxu0 0
        %627 = vmatpush1.bf16.xpose.msra.mxu0 0
        %628 = vmatprep.subr.bf16.mxu0 0
        %629 = vmatpush1.bf16.xpose.msra.mxu0 0
        %630 = vmatprep.subr.bf16.mxu0 0
        %631 = vmatpush1.bf16.xpose.msra.mxu0 0
        %632 = vmatprep.subr.bf16.mxu0 0
        %633 = vmatpush1.bf16.xpose.msra.mxu0 0
        %634 = vmatprep.subr.bf16.mxu0 0
        %635 = vmatpush1.bf16.xpose.msra.mxu0 0
        %636 = vmatprep.subr.bf16.mxu0 0
        %637 = vmatpush1.bf16.xpose.msra.mxu0 0
        %638 = vmatprep.subr.bf16.mxu0 0
        %639 = vmatpush1.bf16.xpose.msra.mxu0 0
        %640 = vmatprep.subr.bf16.mxu0 0
        %641 = vmatpush1.bf16.xpose.msra.mxu0 0
        %642 = vmatprep.subr.bf16.mxu0 0
        %643 = vmatpush1.bf16.xpose.msra.mxu0 0
        %644 = vmatprep.subr.bf16.mxu0 0
        %645 = vmatpush1.bf16.xpose.msra.mxu0 0
        %646 = vmatprep.subr.bf16.mxu0 0
        %647 = vmatpush1.bf16.xpose.msra.mxu0 0
        %648 = vmatprep.subr.bf16.mxu0 0
        %649 = vmatpush1.bf16.xpose.msra.mxu0 0
        %650 = vmatprep.subr.bf16.mxu0 0
        %651 = vmatpush1.bf16.xpose.msra.mxu0 0
        %652 = vmatprep.mubr.bf16.mxu0 0
        %653 = vmatmul.mubr.bf16.gmra.mrb[0].mxu0 %v615
        %v654 = vpop.f32.mrb[0].mxu0
        %v655 = vadd.f32 0.0, %v654
        %v656 = vpop.f32.mrb[0].mxu0
        %v657 = vpop.f32.mrb[0].mxu0
        %v658 = vadd.f32 0.0, %v657
        %v659 = vpop.f32.mrb[0].mxu0
        %660 = vdwg.mxu0
        %v661 = vsel %vm405, %v655, -inf
        %662 = vmax.xlane.f32.xlu0 %v661
        %v663 = vpop.xlane.xlu0 %662
        %v664 = vsel %vm405, %v658, -inf
        %665 = vmax.xlane.f32.xlu0 %v664
        %v666 = vpop.xlane.xlu0 %665
        %v667 = vsub.f32 %v655, %v663
        %v668 = vsub.f32 %v658, %v666
        %v669 = vmul.f32 %v667, 1.442695
        %v670 = vpow.pop %v669
        %v671 = vmul.f32 %v668, 1.442695
        %v672 = vpow.pop %v671
        %v673 = vsel %vm405, %v670, 0.0
        %674 = vadd.xlane.f32.xlu0 %v673
        %v675 = vpop.xlane.xlu0 %674
        %v676 = vsel %vm405, %v672, 0.0
        %677 = vadd.xlane.f32.xlu0 %v676
        %v678 = vpop.xlane.xlu0 %677
        %v679 = vrcp.pop %v675
        %v680 = vrcp.pop %v678
        %v681 = vmul.f32 %v670, %v679
        %v682 = vmul.f32 %v672, %v680
        %v683 = vpack.c.bf16 %v682, %v681
        %684 = vrot.lane.b32.xlu0 %v608, 48
        %v685 = vpop.permute.xlu0 %684
        %v688 = vsel %vm405, %v683, 0
        %690 = vmatprep.subr.bf16.mxu0 0
        %691 = vmatpush1.bf16.msra.mxu0 %v685
        %692 = vmatprep.subr.bf16.mxu0 0
        %693 = vmatpush1.bf16.msra.mxu0 0
        %694 = vmatprep.subr.bf16.mxu0 0
        %695 = vmatpush1.bf16.msra.mxu0 0
        %696 = vmatprep.subr.bf16.mxu0 0
        %697 = vmatpush1.bf16.msra.mxu0 0
        %698 = vmatprep.subr.bf16.mxu0 0
        %699 = vmatpush1.bf16.msra.mxu0 0
        %700 = vmatprep.subr.bf16.mxu0 0
        %701 = vmatpush1.bf16.msra.mxu0 0
        %702 = vmatprep.subr.bf16.mxu0 0
        %703 = vmatpush1.bf16.msra.mxu0 0
        %704 = vmatprep.subr.bf16.mxu0 0
        %705 = vmatpush1.bf16.msra.mxu0 0
        %706 = vmatprep.subr.bf16.mxu0 0
        %707 = vmatpush1.bf16.msra.mxu0 0
        %708 = vmatprep.subr.bf16.mxu0 0
        %709 = vmatpush1.bf16.msra.mxu0 0
        %710 = vmatprep.subr.bf16.mxu0 0
        %711 = vmatpush1.bf16.msra.mxu0 0
        %712 = vmatprep.subr.bf16.mxu0 0
        %713 = vmatpush1.bf16.msra.mxu0 0
        %714 = vmatprep.subr.bf16.mxu0 0
        %715 = vmatpush1.bf16.msra.mxu0 0
        %716 = vmatprep.subr.bf16.mxu0 0
        %717 = vmatpush1.bf16.msra.mxu0 0
        %718 = vmatprep.subr.bf16.mxu0 0
        %719 = vmatpush1.bf16.msra.mxu0 0
        %720 = vmatprep.subr.bf16.mxu0 0
        %721 = vmatpush1.bf16.msra.mxu0 0
        %722 = vmatprep.mubr.bf16.mxu0 0
        %723 = vmatmul.mubr.bf16.gmra.mrb[0].mxu0 %v688
        %v724 = vpop.f32.mrb[0].mxu0
        %v725 = vadd.f32 0.0, %v724
        %v726 = vpop.f32.mrb[0].mxu0
        %v727 = vpop.f32.mrb[0].mxu0
        %v728 = vadd.f32 0.0, %v727
        %v729 = vpop.f32.mrb[0].mxu0
        %730 = vdwg.mxu0
        %v731 = vpack.c.bf16 %v728, %v725
        %733 = vrot.lane.b32.xlu0 %v731, 16
        %v734 = vpop.permute.xlu0 %733
        %vm736 = vcmask 195712
        %737 = vst.msk [vmem:[#allocation3] sm:$0xff] %vm736, %v734
        %v738 = vld [vmem:[#allocation2] sm:$0xff]
        %740 = vrot.lane.b32.xlu0 %v738, 104
        %v741 = vpop.permute.xlu0 %740
        %742 = vrot.lane.b32.xlu0 %v738, 72
        %v743 = vpop.permute.xlu0 %742
        %v745 = vsel %vm357, %v741, 0
        %v748 = vsel %vm357, %v743, 0
        %750 = vmatprep.subr.bf16.mxu0 0
        %751 = vmatpush1.bf16.xpose.msra.mxu0 %v748
        %752 = vmatprep.subr.bf16.mxu0 0
        %753 = vmatpush1.bf16.xpose.msra.mxu0 0
        %754 = vmatprep.subr.bf16.mxu0 0
        %755 = vmatpush1.bf16.xpose.msra.mxu0 0
        %756 = vmatprep.subr.bf16.mxu0 0
        %757 = vmatpush1.bf16.xpose.msra.mxu0 0
        %758 = vmatprep.subr.bf16.mxu0 0
        %759 = vmatpush1.bf16.xpose.msra.mxu0 0
        %760 = vmatprep.subr.bf16.mxu0 0
        %761 = vmatpush1.bf16.xpose.msra.mxu0 0
        %762 = vmatprep.subr.bf16.mxu0 0
        %763 = vmatpush1.bf16.xpose.msra.mxu0 0
        %764 = vmatprep.subr.bf16.mxu0 0
        %765 = vmatpush1.bf16.xpose.msra.mxu0 0
        %766 = vmatprep.subr.bf16.mxu0 0
        %767 = vmatpush1.bf16.xpose.msra.mxu0 0
        %768 = vmatprep.subr.bf16.mxu0 0
        %769 = vmatpush1.bf16.xpose.msra.mxu0 0
        %770 = vmatprep.subr.bf16.mxu0 0
        %771 = vmatpush1.bf16.xpose.msra.mxu0 0
        %772 = vmatprep.subr.bf16.mxu0 0
        %773 = vmatpush1.bf16.xpose.msra.mxu0 0
        %774 = vmatprep.subr.bf16.mxu0 0
        %775 = vmatpush1.bf16.xpose.msra.mxu0 0
        %776 = vmatprep.subr.bf16.mxu0 0
        %777 = vmatpush1.bf16.xpose.msra.mxu0 0
        %778 = vmatprep.subr.bf16.mxu0 0
        %779 = vmatpush1.bf16.xpose.msra.mxu0 0
        %780 = vmatprep.subr.bf16.mxu0 0
        %781 = vmatpush1.bf16.xpose.msra.mxu0 0
        %782 = vmatprep.mubr.bf16.mxu0 0
        %783 = vmatmul.mubr.bf16.gmra.mrb[0].mxu0 %v745
        %v784 = vpop.f32.mrb[0].mxu0
        %v785 = vadd.f32 0.0, %v784
        %v786 = vpop.f32.mrb[0].mxu0
        %v787 = vpop.f32.mrb[0].mxu0
        %v788 = vadd.f32 0.0, %v787
        %v789 = vpop.f32.mrb[0].mxu0
        %790 = vdwg.mxu0
        %v791 = vsel %vm405, %v785, -inf
        %792 = vmax.xlane.f32.xlu0 %v791
        %v793 = vpop.xlane.xlu0 %792
        %v794 = vsel %vm405, %v788, -inf
        %795 = vmax.xlane.f32.xlu0 %v794
        %v796 = vpop.xlane.xlu0 %795
        %v797 = vsub.f32 %v785, %v793
        %v798 = vsub.f32 %v788, %v796
        %v799 = vmul.f32 %v797, 1.442695
        %v800 = vpow.pop %v799
        %v801 = vmul.f32 %v798, 1.442695
        %v802 = vpow.pop %v801
        %v803 = vsel %vm405, %v800, 0.0
        %804 = vadd.xlane.f32.xlu0 %v803
        %v805 = vpop.xlane.xlu0 %804
        %v806 = vsel %vm405, %v802, 0.0
        %807 = vadd.xlane.f32.xlu0 %v806
        %v808 = vpop.xlane.xlu0 %807
        %v809 = vrcp.pop %v805
        %v810 = vrcp.pop %v808
        %v811 = vmul.f32 %v800, %v809
        %v812 = vmul.f32 %v802, %v810
        %v813 = vpack.c.bf16 %v812, %v811
        %814 = vrot.lane.b32.xlu0 %v738, 40
        %v815 = vpop.permute.xlu0 %814
        %v818 = vsel %vm405, %v813, 0
        %820 = vmatprep.subr.bf16.mxu0 0
        %821 = vmatpush1.bf16.msra.mxu0 %v815
        %822 = vmatprep.subr.bf16.mxu0 0
        %823 = vmatpush1.bf16.msra.mxu0 0
        %824 = vmatprep.subr.bf16.mxu0 0
        %825 = vmatpush1.bf16.msra.mxu0 0
        %826 = vmatprep.subr.bf16.mxu0 0
        %827 = vmatpush1.bf16.msra.mxu0 0
        %828 = vmatprep.subr.bf16.mxu0 0
        %829 = vmatpush1.bf16.msra.mxu0 0
        %830 = vmatprep.subr.bf16.mxu0 0
        %831 = vmatpush1.bf16.msra.mxu0 0
        %832 = vmatprep.subr.bf16.mxu0 0
        %833 = vmatpush1.bf16.msra.mxu0 0
        %834 = vmatprep.subr.bf16.mxu0 0
        %835 = vmatpush1.bf16.msra.mxu0 0
        %836 = vmatprep.subr.bf16.mxu0 0
        %837 = vmatpush1.bf16.msra.mxu0 0
        %838 = vmatprep.subr.bf16.mxu0 0
        %839 = vmatpush1.bf16.msra.mxu0 0
        %840 = vmatprep.subr.bf16.mxu0 0
        %841 = vmatpush1.bf16.msra.mxu0 0
        %842 = vmatprep.subr.bf16.mxu0 0
        %843 = vmatpush1.bf16.msra.mxu0 0
        %844 = vmatprep.subr.bf16.mxu0 0
        %845 = vmatpush1.bf16.msra.mxu0 0
        %846 = vmatprep.subr.bf16.mxu0 0
        %847 = vmatpush1.bf16.msra.mxu0 0
        %848 = vmatprep.subr.bf16.mxu0 0
        %849 = vmatpush1.bf16.msra.mxu0 0
        %850 = vmatprep.subr.bf16.mxu0 0
        %851 = vmatpush1.bf16.msra.mxu0 0
        %852 = vmatprep.mubr.bf16.mxu0 0
        %853 = vmatmul.mubr.bf16.gmra.mrb[0].mxu0 %v818
        %v854 = vpop.f32.mrb[0].mxu0
        %v855 = vadd.f32 0.0, %v854
        %v856 = vpop.f32.mrb[0].mxu0
        %v857 = vpop.f32.mrb[0].mxu0
        %v858 = vadd.f32 0.0, %v857
        %v859 = vpop.f32.mrb[0].mxu0
        %860 = vdwg.mxu0
        %v861 = vpack.c.bf16 %v858, %v855
        %863 = vrot.lane.b32.xlu0 %v861, 24
        %v864 = vpop.permute.xlu0 %863
        %vm866 = vcmask 261312
        %867 = vst.msk [vmem:[#allocation3] sm:$0xff] %vm866, %v864
        %v868 = vld [vmem:[#allocation3] sm:$0xff]
        %v869 = vld [vmem:[#allocation9] sm:$0xf]
        %v870 = vld [vmem:[#allocation9 + $0x4] sm:$0xf]
        %v871 = vld [vmem:[#allocation9 + $0x8] sm:$0xf]
        %v872 = vld [vmem:[#allocation9 + $0xc] sm:$0xf]
        %v873 = vld [vmem:[%s4] sm:$0x1]
        %v875 = vlaneseq
        %v876 = vshrl.u32 %v875, 7
        %v877 = vsub.s32 0, %v876
        %v878 = vrot.slane %v873, %v877
        %v884 = vunpack.c.l.b16 %v869
        %v885 = vunpack.c.l.b16 %v870
        %v886 = vunpack.c.l.b16 %v871
        %v887 = vunpack.c.l.b16 %v872
        %v888 = vpack.c.b16 %v885, %v884
        %v889 = vpack.c.b16 %v887, %v886
        %v893 = vsel %vm305, %v868, 0
        %895 = vmatprep.subr.bf16.mxu0 0
        %896 = vmatpush1.bf16.msra.mxu0 %v888
        %897 = vmatprep.subr.bf16.mxu0 0
        %898 = vmatpush1.bf16.msra.mxu0 %v889
        %899 = vmatprep.subr.bf16.mxu0 0
        %900 = vmatpush1.bf16.msra.mxu0 0
        %901 = vmatprep.subr.bf16.mxu0 0
        %902 = vmatpush1.bf16.msra.mxu0 0
        %903 = vmatprep.subr.bf16.mxu0 0
        %904 = vmatpush1.bf16.msra.mxu0 0
        %905 = vmatprep.subr.bf16.mxu0 0
        %906 = vmatpush1.bf16.msra.mxu0 0
        %907 = vmatprep.subr.bf16.mxu0 0
        %908 = vmatpush1.bf16.msra.mxu0 0
        %909 = vmatprep.subr.bf16.mxu0 0
        %910 = vmatpush1.bf16.msra.mxu0 0
        %911 = vmatprep.subr.bf16.mxu0 0
        %912 = vmatpush1.bf16.msra.mxu0 0
        %913 = vmatprep.subr.bf16.mxu0 0
        %914 = vmatpush1.bf16.msra.mxu0 0
        %915 = vmatprep.subr.bf16.mxu0 0
        %916 = vmatpush1.bf16.msra.mxu0 0
        %917 = vmatprep.subr.bf16.mxu0 0
        %918 = vmatpush1.bf16.msra.mxu0 0
        %919 = vmatprep.subr.bf16.mxu0 0
        %920 = vmatpush1.bf16.msra.mxu0 0
        %921 = vmatprep.subr.bf16.mxu0 0
        %922 = vmatpush1.bf16.msra.mxu0 0
        %923 = vmatprep.subr.bf16.mxu0 0
        %924 = vmatpush1.bf16.msra.mxu0 0
        %925 = vmatprep.subr.bf16.mxu0 0
        %926 = vmatpush1.bf16.msra.mxu0 0
        %927 = vmatprep.mubr.bf16.mxu0 0
        %928 = vmatmul.mubr.bf16.gmra.mrb[0].mxu0 %v893
        %v929 = vpop.f32.mrb[0].mxu0
        %v930 = vadd.f32 %v878, %v929
        %v931 = vpop.f32.mrb[0].mxu0
        %v932 = vpop.f32.mrb[0].mxu0
        %v933 = vadd.f32 %v878, %v932
        %v934 = vpop.f32.mrb[0].mxu0
        %935 = vdwg.mxu0
        %936 = vst.msk [vmem:[%s271] sm:$0xff] %vm305, %v930
        %937 = vst.msk [vmem:[%s271 + $0x8] sm:$0xff] %vm305, %v933
        %s938 = sand.u32 %s141, 1
        %s939 = scalar_lea.sflag [#allocation6], %s938
        %s940 = sand.u32 %s141, 1
        %s941 = smul.addr %s940, 16
        %s942 = scalar_lea.vmem [#allocation10], %s941
        // Predicated region
        $region53: #{tpu_custom_call.1} parent=39 // pred_check
          %p943 = pneg %p151
        $region54: #{tpu_custom_call.1} parent=39 // pred_check_branch
          %945 = sbr.rel (%p943) target = $region56
        $region55: #{tpu_custom_call.1} parent=39 // pred_region
          %s946 = smul.u32 2, %s23
          %s948 = ssub.s32 256, 256
          %949 = vsyncadd %s939, %s948
          %s950 = smul.addr %s946, 128
          %s951 = scalar_lea.hbm %s5, %s950
          %s952 = sshll.u32 %s942, 4
          %s953 = int_to_ptr.vmem [resolvable:$true] %s952
          %958 = dma.vmem_to_hbm [thread:$0]  %s953, 256, %s951, %s939, 128, 128, 8
        $region56: #{tpu_custom_call.1} parent=39 // pred_fallthru
          _
      $region40: #{tpu_custom_call.1} parent=5 // pred_fallthru
        _
      %p959 = scmp.le.s32.totalorder 2, %s18
      // Predicated region
      $region57: #{tpu_custom_call.1} parent=5 // pred_check
        %p960 = pneg %p959
      $region58: #{tpu_custom_call.1} parent=5 // pred_check_branch
        %962 = sbr.rel (%p960) target = $region60
      $region59: #{tpu_custom_call.1} parent=5 // pred_region
        %s963 = ssub.s32 %s18, 2
        // Predicated region
        $region61: #{tpu_custom_call.1} parent=59 // pred_check
          %p964 = pneg %p157
        $region62: #{tpu_custom_call.1} parent=59 // pred_check_branch
          %966 = sbr.rel (%p964) target = $region64
        $region63: #{tpu_custom_call.1} parent=59 // pred_region
          %s967 = sand.u32 %s142, 1
          %s968 = scalar_lea.sflag [#allocation6], %s967
          %s969 = sand.u32 %s142, 1
          %s970 = smul.addr %s969, 16
          %s971 = scalar_lea.vmem [#allocation10], %s970
          %972 = dma.done %s968, 256
        $region64: #{tpu_custom_call.1} parent=59 // pred_fallthru
          _
      $region60: #{tpu_custom_call.1} parent=5 // pred_fallthru
        _
    $region6: #{tpu_custom_call.1} parent=1 // loop_footer
      %s22 = sadd.s32 1, %s18
    $region7: #{tpu_custom_call.1} parent=1 // loop_footer_branch
      %17 = sbr.rel target = $region3
    $region8: #{tpu_custom_call.1} parent=1 // loop_exit
      _
    %973 = vsyncpa [#allocation5], 1
    %s974 = scalar_lea.sflag [#allocation5], 1
    %975 = vsyncpa %s974, 1
    %976 = vsyncpa [#allocation8], 1
    %977 = vsyncpa [#allocation6], 1
    %s978 = scalar_lea.sflag [#allocation6], 1
    %979 = vsyncpa %s978, 1

</llo_original>
